<compile_context>
chip_gen: v5e
topology: v5e:2x2
jax: 0.10.0
libtpu: 0.0.40
codegen_flags: <defaults>
</compile_context>

<pallas_src>
import functools

import numpy as np
import jax
import jax.numpy as jnp
from jax.experimental import pallas as pl
from jax.experimental.pallas import tpu as pltpu

SQRT_2_OVER_PI = float(np.sqrt(2.0 / np.pi))
NAN_TO_NUM_MAP = {"london": -1.21, "melbourne": -0.8, "madrid": -0.56}

# bf16 MXU operands (f32 accumulate); native fast path on v6e/v7x, MXU-native
# on v5e too.  VAE matmuls are kept f32 regardless (see pallas_vae).
MXU_BF16 = True

_MAX_ROW_TILE = 512   # review: tile 512 ~85% of HBM roofline vs ~63% at 256


def _vmem_limit_bytes():
    """Generation-aware scoped-VMEM limit (review item)."""
    cap = None
    try:
        cap = getattr(pltpu.get_tpu_info(), "vmem_capacity_bytes", None)
    except Exception:
        cap = None
    if cap is None:
        return 48 * 1024 * 1024                       # unknown: safe everywhere
    if cap >= 128 * 1024 * 1024:                       # v5e / v6e
        return 96 * 1024 * 1024
    # v7x (64 MiB physical): leave Mosaic scratch headroom
    return max(32 * 1024 * 1024, min(cap - 12 * 1024 * 1024, 56 * 1024 * 1024))


_CP = pltpu.CompilerParams(
    dimension_semantics=("parallel",),                 # row axis shards across TCs
    vmem_limit_bytes=_vmem_limit_bytes(),
)

# ---- single-buffered grid-invariant blocks (probed once, safe fallback) ----
_PIPELINE_MODE_OK = None


def _pipeline_mode_ok():
    global _PIPELINE_MODE_OK
    if _PIPELINE_MODE_OK is not None:
        return _PIPELINE_MODE_OK
    try:
        def _probe(x_ref, o_ref):
            o_ref[...] = x_ref[...]
        x = jnp.zeros((8, 128), jnp.float32)
        pl.pallas_call(
            _probe,
            out_shape=jax.ShapeDtypeStruct((8, 128), jnp.float32),
            grid=(1,),
            in_specs=[pl.BlockSpec((8, 128), lambda i: (0, 0),
                                   pipeline_mode=pl.Buffered(1))],
            out_specs=pl.BlockSpec((8, 128), lambda i: (0, 0)),
        )(x).block_until_ready()
        _PIPELINE_MODE_OK = True
    except Exception:
        _PIPELINE_MODE_OK = False
    return _PIPELINE_MODE_OK


def _const_spec(shape):
    """Grid-invariant operand (weight/bias): fetched once; single-buffered to
    halve its resident VMEM when the jax version supports pipeline_mode."""
    if _pipeline_mode_ok():
        return pl.BlockSpec(shape, lambda i: (0, 0), pipeline_mode=pl.Buffered(1))
    return pl.BlockSpec(shape, lambda i: (0, 0))


def _row_tile(m):
    # TODO(synk): on v7x (2 TCs) split M<=512 into >=2 blocks so both cores work.
    return m if m <= _MAX_ROW_TILE else _MAX_ROW_TILE


def _dot(a, b):
    if MXU_BF16:
        a = a.astype(jnp.bfloat16)
        b = b.astype(jnp.bfloat16)
    return jnp.dot(a, b, preferred_element_type=jnp.float32)


def _dot_f32(a, b):
    return jnp.dot(a, b, preferred_element_type=jnp.float32)


def _wcast(w):
    return w.astype(jnp.bfloat16) if MXU_BF16 else w


def _gelu(x):
    # Matches RecLinear.gelu (tanh approximation), kept in f32 on the VPU.
    return 0.5 * x * (1.0 + jnp.tanh(SQRT_2_OVER_PI * (x + 0.044715 * x * x * x)))


def _act(y, act):
    if act == "gelu":
        return _gelu(y)
    if act == "leaky_0.01":
        return jnp.where(y > 0, y, 0.01 * y)
    return y


def _block_diag(a, b):
    za = jnp.zeros((a.shape[0], b.shape[1]), a.dtype)
    zb = jnp.zeros((b.shape[0], a.shape[1]), b.dtype)
    return jnp.concatenate([jnp.concatenate([a, za], axis=1),
                            jnp.concatenate([zb, b], axis=1)], axis=0)


# --------------------------------------------------------------------------
# Pallas kernels
# --------------------------------------------------------------------------
def _linear_kernel(*refs, act, has_bias):
    x_ref, w_ref = refs[0], refs[1]
    o_ref = refs[-1]
    y = _dot(x_ref[...], w_ref[...])
    if has_bias:
        y = y + refs[2][...]
    o_ref[...] = _act(y, act).astype(o_ref.dtype)


def pallas_linear(x, w, b=None, act="none"):
    """y = act(x @ w [+ b]); row-blocked grid, partial tail block masked."""
    M, K = x.shape
    N = w.shape[1]
    tm = _row_tile(M)
    args = [x, w]
    in_specs = [pl.BlockSpec((tm, K), lambda i: (i, 0)), _const_spec((K, N))]
    if b is not None:
        args.append(b.reshape(1, N))
        in_specs.append(_const_spec((1, N)))
    return pl.pallas_call(
        functools.partial(_linear_kernel, act=act, has_bias=b is not None),
        out_shape=jax.ShapeDtypeStruct((M, N), jnp.float32),
        grid=(pl.cdiv(M, tm),),
        in_specs=in_specs,
        out_specs=pl.BlockSpec((tm, N), lambda i: (i, 0)),
        compiler_params=_CP,
    )(*args)


def _vae_kernel(x_ref, eps_ref, w1_ref, b1_ref, w2_ref, b2_ref, w3_ref, b3_ref,
                w4_ref, b4_ref, w5_ref, b5_ref, o_ref):
    # encode / reparameterize / decode; fc5 output columns are tiled over the
    # grid, the tiny (in_ch-row) encoder is recomputed per tile (weights are
    # grid-invariant, so no extra DMA).  Kept in f32 (mu/log_var feed exp()).
    h = _gelu(_dot_f32(x_ref[...], w1_ref[...]) + b1_ref[...])
    mu = _dot_f32(h, w2_ref[...]) + b2_ref[...]
    log_var = _dot_f32(h, w3_ref[...]) + b3_ref[...]
    z = mu + eps_ref[...] * jnp.exp(0.5 * log_var)
    h2 = _gelu(_dot_f32(z, w4_ref[...]) + b4_ref[...])
    o_ref[...] = (_dot_f32(h2, w5_ref[...]) + b5_ref[...]).astype(o_ref.dtype)


def pallas_vae(x_t, eps, p):
    """Fused VAE; h/mu/log_var/z stay in VMEM; fc5 columns stream via the grid.

    TODO(synk): at very large num_nodes fc1's K axis also needs tiling
    (trailing 'arbitrary' axis + f32 accumulator scratch); the resident full
    fc1 block is fine up to ~num_nodes=32k even on v7x."""
    in_ch, num_nodes = x_t.shape
    tn = num_nodes if num_nodes <= 512 else 512
    w1, b1 = p["fc1"]
    w2, b2 = p["fc2"]
    w3, b3 = p["fc3"]
    w4, b4 = p["fc4"]
    w5, b5 = p["fc5"]
    in_specs = [
        _const_spec(x_t.shape), _const_spec(eps.shape),
        _const_spec(w1.shape), _const_spec((1, b1.shape[0])),
        _const_spec(w2.shape), _const_spec((1, b2.shape[0])),
        _const_spec(w3.shape), _const_spec((1, b3.shape[0])),
        _const_spec(w4.shape), _const_spec((1, b4.shape[0])),
        pl.BlockSpec((w5.shape[0], tn), lambda i: (0, i)),
        pl.BlockSpec((1, tn), lambda i: (0, i)),
    ]
    return pl.pallas_call(
        _vae_kernel,
        out_shape=jax.ShapeDtypeStruct((in_ch, num_nodes), jnp.float32),
        grid=(pl.cdiv(num_nodes, tn),),
        in_specs=in_specs,
        out_specs=pl.BlockSpec((in_ch, tn), lambda i: (0, i)),
        compiler_params=_CP,
    )(x_t, eps, w1, b1.reshape(1, -1), w2, b2.reshape(1, -1),
      w3, b3.reshape(1, -1), w4, b4.reshape(1, -1), w5, b5.reshape(1, -1))


def _attr_kernel(attr_ref, wa_ref, ba_ref, w0_ref, b0_ref, w2_ref, b2_ref,
                 attr1_ref, a1_ref):
    a = attr_ref[...]
    attr1_ref[...] = (_dot(a, wa_ref[...]) + ba_ref[...]).astype(attr1_ref.dtype)
    t = _dot(a, w0_ref[...]) + b0_ref[...]
    t = jnp.where(t > 0, t, 0.01 * t)                  # nn.LeakyReLU() default
    a1_ref[...] = (_dot(t, w2_ref[...]) + b2_ref[...]).astype(a1_ref.dtype)


def pallas_attr(attr, p):
    """attr_lin and attr_lin1 (Linear/LeakyReLU/Linear) share one load of attr.

    TODO(synk): the two (tm,H) stores are lane-masked at H<128; consumers
    differ (segment-mean vs tail MLP) so they stay separate outputs."""
    E, A = attr.shape
    wa, ba = p["attr_lin"]
    w0, b0 = p["attr_lin1_0"]
    w2, b2 = p["attr_lin1_2"]
    H = wa.shape[1]
    tm = _row_tile(E)
    row_out = pl.BlockSpec((tm, H), lambda i: (i, 0))
    return pl.pallas_call(
        _attr_kernel,
        out_shape=(jax.ShapeDtypeStruct((E, H), jnp.float32),
                   jax.ShapeDtypeStruct((E, H), jnp.float32)),
        grid=(pl.cdiv(E, tm),),
        in_specs=[
            pl.BlockSpec((tm, A), lambda i: (i, 0)),
            _const_spec((A, H)), _const_spec((1, H)),
            _const_spec((A, H)), _const_spec((1, H)),
            _const_spec((H, H)), _const_spec((1, H)),
        ],
        out_specs=(row_out, row_out),
        compiler_params=_CP,
    )(attr, wa, ba.reshape(1, H), w0, b0.reshape(1, H), w2, b2.reshape(1, H))


def _gat_lin_kernel(h_ref, wl_ref, bl_ref, wr_ref, br_ref, xl_ref, xr_ref):
    h = h_ref[...]
    xl_ref[...] = (_dot(h, wl_ref[...]) + bl_ref[...]).astype(xl_ref.dtype)
    xr_ref[...] = (_dot(h, wr_ref[...]) + br_ref[...]).astype(xr_ref.dtype)


def pallas_gat_lin(h, wl, bl, wr, br):
    """GATv2 lin_l / lin_r sharing one load of h; two outputs (no wrapper split)."""
    M, K = h.shape
    H = wl.shape[1]
    tm = _row_tile(M)
    row_out = pl.BlockSpec((tm, H), lambda i: (i, 0))
    return pl.pallas_call(
        _gat_lin_kernel,
        out_shape=(jax.ShapeDtypeStruct((M, H), jnp.float32),) * 2,
        grid=(pl.cdiv(M, tm),),
        in_specs=[pl.BlockSpec((tm, K), lambda i: (i, 0)),
                  _const_spec((K, H)), _const_spec((1, H)),
                  _const_spec((K, H)), _const_spec((1, H))],
        out_specs=(row_out, row_out),
        compiler_params=_CP,
    )(h, wl, bl.reshape(1, H), wr, br.reshape(1, H))


def _gelu_add_gat_lin_kernel(c_ref, p_ref, wl_ref, bl_ref, wr_ref, br_ref,
                             xl_ref, xr_ref):
    h = _gelu(c_ref[...]) + p_ref[...]
    xl_ref[...] = (_dot(h, wl_ref[...]) + bl_ref[...]).astype(xl_ref.dtype)
    xr_ref[...] = (_dot(h, wr_ref[...]) + br_ref[...]).astype(xr_ref.dtype)


def pallas_gelu_add_gat_lin(conv_out, pre, wl, bl, wr, br):
    """(gelu(conv_out) + pre) -> lin_l / lin_r, fused (residual prologue)."""
    M, K = conv_out.shape
    H = wl.shape[1]
    tm = _row_tile(M)
    row_in = pl.BlockSpec((tm, K), lambda i: (i, 0))
    row_out = pl.BlockSpec((tm, H), lambda i: (i, 0))
    return pl.pallas_call(
        _gelu_add_gat_lin_kernel,
        out_shape=(jax.ShapeDtypeStruct((M, H), jnp.float32),) * 2,
        grid=(pl.cdiv(M, tm),),
        in_specs=[row_in, row_in,
                  _const_spec((K, H)), _const_spec((1, H)),
                  _const_spec((K, H)), _const_spec((1, H))],
        out_specs=(row_out, row_out),
        compiler_params=_CP,
    )(conv_out, pre, wl, bl.reshape(1, H), wr, br.reshape(1, H))


def _node_gat0_kernel(x_ref, wn_ref, bn_ref, wl_ref, bl_ref, wr_ref, br_ref,
                      d_ref, xl_ref, xr_ref):
    d = _gelu(_dot(x_ref[...], wn_ref[...]) + bn_ref[...])
    d_ref[...] = d.astype(d_ref.dtype)
    xl_ref[...] = (_dot(d, wl_ref[...]) + bl_ref[...]).astype(xl_ref.dtype)
    xr_ref[...] = (_dot(d, wr_ref[...]) + br_ref[...]).astype(xr_ref.dtype)


def pallas_node_gat0(x, wn, bn, wl, bl, wr, br):
    """gelu(node_lin(x_rec1)) fused with conv2 layer-0's lin_l / lin_r.
    Also emits data0 (needed as the residual for the rest of the chain)."""
    M, K = x.shape
    H = wn.shape[1]
    tm = _row_tile(M)
    row_out = pl.BlockSpec((tm, H), lambda i: (i, 0))
    return pl.pallas_call(
        _node_gat0_kernel,
        out_shape=(jax.ShapeDtypeStruct((M, H), jnp.float32),) * 3,
        grid=(pl.cdiv(M, tm),),
        in_specs=[pl.BlockSpec((tm, K), lambda i: (i, 0)),
                  _const_spec((K, H)), _const_spec((1, H)),
                  _const_spec((H, H)), _const_spec((1, H)),
                  _const_spec((H, H)), _const_spec((1, H))],
        out_specs=(row_out, row_out, row_out),
        compiler_params=_CP,
    )(x, wn, bn.reshape(1, H), wl, bl.reshape(1, H), wr, br.reshape(1, H))


def _gelu_add_pair_kernel(c2_ref, p2_ref, c1_ref, p1_ref, o_ref, *, h):
    # [:, :h] = data (chain 2), [:, h:] = node_embed (chain 1)
    o_ref[:, :h] = _gelu(c2_ref[...]) + p2_ref[...]
    o_ref[:, h:] = _gelu(c1_ref[...]) + p1_ref[...]


def pallas_gelu_add_pair(c2, p2, c1, p1):
    """Final gelu+residual of both conv chains, written as one (N, 2H) array so
    only two src/dst gathers feed the fused tail kernel."""
    M, H = c2.shape
    tm = _row_tile(M)
    row_in = pl.BlockSpec((tm, H), lambda i: (i, 0))
    return pl.pallas_call(
        functools.partial(_gelu_add_pair_kernel, h=H),
        out_shape=jax.ShapeDtypeStruct((M, 2 * H), jnp.float32),
        grid=(pl.cdiv(M, tm),),
        in_specs=[row_in, row_in, row_in, row_in],
        out_specs=pl.BlockSpec((tm, 2 * H), lambda i: (i, 0)),
        compiler_params=_CP,
    )(c2, p2, c1, p1)


def _tail_kernel(*refs, n_rest):
    (dns_ref, dnd_ref, emb_ref, a1_ref, te_ref, we_ref,
     wga_ref, wgb_ref, bg_ref,
     w0e_ref, w0a_ref, w0g_ref, w0t_ref, w0w_ref, b0_ref) = refs[:15]
    rest = refs[15:-1]
    o_ref = refs[-1]
    # gcn_lin1 / gcn_lin2 on the concatenated [data | node_embed] rows via
    # pre-built block-diagonal weights: gx = [xg | x1]   (no in-kernel slicing)
    gx = (_dot(dns_ref[...], wga_ref[...]) + _dot(dnd_ref[...], wgb_ref[...])
          + bg_ref[...])
    # lins[0] over the virtual [embed|a1|xg|x1|te|we] concat, one segment each
    y = (_dot(emb_ref[...], w0e_ref[...]) + _dot(a1_ref[...], w0a_ref[...])
         + _dot(gx, w0g_ref[...]) + _dot(te_ref[...], w0t_ref[...])
         + _dot(we_ref[...], w0w_ref[...]) + b0_ref[...])
    y = _gelu(y)
    for l in range(n_rest):
        y = _dot(y, rest[2 * l][...]) + rest[2 * l + 1][...]
        if l < n_rest - 1:
            y = _gelu(y)
    o_ref[...] = y.astype(o_ref.dtype)


def pallas_tail(dn_src, dn_dst, embed, a1, te, we, p):
    """gcn_lin1 + gcn_lin2 + the 6H concat + the whole `lins` MLP in ONE kernel:
    xg / x1 / xf never touch HBM."""
    E, twoH = dn_src.shape
    H = twoH // 2
    out_ch = p["lins_rest"][-1][0].shape[1]
    tm = _row_tile(E)

    def row(n):
        return pl.BlockSpec((tm, n), lambda i: (i, 0))

    args = [dn_src, dn_dst, embed, a1, te, we,
            p["Wg_src"], p["Wg_dst"], p["bg"],
            p["W0_embed"], p["W0_attr"], p["W0_gx"], p["W0_time"],
            p["W0_week"], p["b0"]]
    in_specs = [row(twoH), row(twoH), row(H), row(H), row(H), row(H),
                _const_spec((twoH, twoH)), _const_spec((twoH, twoH)),
                _const_spec((1, twoH)),
                _const_spec((H, H)), _const_spec((H, H)),
                _const_spec((twoH, H)), _const_spec((H, H)),
                _const_spec((H, H)), _const_spec((1, H))]
    for w, b in p["lins_rest"]:
        args += [w, b]
        in_specs += [_const_spec(w.shape), _const_spec((1, w.shape[1]))]

    return pl.pallas_call(
        functools.partial(_tail_kernel, n_rest=len(p["lins_rest"])),
        out_shape=jax.ShapeDtypeStruct((E, out_ch), jnp.float32),
        grid=(pl.cdiv(E, tm),),
        in_specs=in_specs,
        out_specs=pl.BlockSpec((tm, out_ch), lambda i: (i, 0)),
        compiler_params=_CP,
    )(*args)


# --------------------------------------------------------------------------
# GATv2Conv (heads=1, add_self_loops=True, fill_value='mean', slope=0.2)
# Linear transforms run in Pallas; gather / segment softmax / scatter are JAX.
# --------------------------------------------------------------------------
def _add_self_loops_mean(edge_index, edge_attr, num_nodes):
    # Shared by all 6 conv layers (depends only on edge_index + attr1).
    src, dst = edge_index[0], edge_index[1]
    ones = jnp.ones((edge_attr.shape[0],), jnp.float32)
    cnt = jax.ops.segment_sum(ones, dst, num_segments=num_nodes)
    loop_attr = (jax.ops.segment_sum(edge_attr, dst, num_segments=num_nodes)
                 / jnp.maximum(cnt, 1.0)[:, None])
    loop_idx = jnp.arange(num_nodes, dtype=src.dtype)
    src_f = jnp.concatenate([src, loop_idx])
    dst_f = jnp.concatenate([dst, loop_idx])
    eattr_f = jnp.concatenate([edge_attr, loop_attr], axis=0)
    return src_f, dst_f, eattr_f


def _gat_attention(xl, xr, xe, att, bias, src_f, dst_f, num_nodes):
    # TODO(synk): per-edge gather + segment softmax/scatter kept in plain JAX;
    # a dst-sorted CSR Pallas kernel (scalar-prefetched row offsets) is the
    # next step now that the dense linears no longer dominate.
    m = xl[src_f] + xr[dst_f] + xe
    m = jnp.where(m > 0, m, 0.2 * m)                  # GATv2 leaky_relu(0.2)
    logits = m @ att
    mx = jax.ops.segment_max(logits, dst_f, num_segments=num_nodes)
    ex = jnp.exp(logits - mx[dst_f])
    den = jax.ops.segment_sum(ex, dst_f, num_segments=num_nodes)
    alpha = ex / (den[dst_f] + 1e-16)
    out = jax.ops.segment_sum(xl[src_f] * alpha[:, None], dst_f,
                              num_segments=num_nodes)
    return out + bias


def _run_gat_chain(h0, xl, xr, convs, xe_list, src_f, dst_f, num_nodes):
    """3x GATv2Conv; residual always adds the chain input h0 — this matches the
    reference, where pre_data is bound ONCE before the loop (not a running x).
    Returns the raw output of the last conv (its gelu+residual is fused
    downstream into pallas_gelu_add_pair)."""
    conv_out = _gat_attention(xl, xr, xe_list[0], convs[0]["att"],
                              convs[0]["bias"], src_f, dst_f, num_nodes)
    for li in range(1, len(convs)):
        prm = convs[li]
        xl, xr = pallas_gelu_add_gat_lin(conv_out, h0, prm["Wl"], prm["bl"],
                                         prm["Wr"], prm["br"])
        conv_out = _gat_attention(xl, xr, xe_list[li], prm["att"], prm["bias"],
                                  src_f, dst_f, num_nodes)
    return conv_out


# --------------------------------------------------------------------------
# Parameter initialization (deterministic, synthetic) + one-time prep pass
# --------------------------------------------------------------------------
def init_params(key, num_edges, num_nodes, num_attrs, in_ch, H, out_ch,
                num_layers):
    keys = iter(jax.random.split(key, 128))

    def lin(fan_in, fan_out):
        k1, k2 = jax.random.split(next(keys))
        bound = 1.0 / np.sqrt(fan_in)
        w = jax.random.uniform(k1, (fan_in, fan_out), jnp.float32, -bound, bound)
        b = jax.random.uniform(k2, (fan_out,), jnp.float32, -bound, bound)
        return w, b

    def emb(n, d):
        return jax.random.normal(next(keys), (n, d), jnp.float32)

    def gat(h):
        Wl, bl = lin(h, h)
        Wr, br = lin(h, h)
        We, _ = lin(h, h)                            # lin_edge has no bias
        att = jax.random.uniform(next(keys), (h,), jnp.float32,
                                 -1.0 / np.sqrt(h), 1.0 / np.sqrt(h))
        return dict(Wl=Wl, bl=bl, Wr=Wr, br=br, We=We, att=att,
                    bias=jnp.zeros((h,), jnp.float32))

    p = {
        "embed": emb(num_edges, H),
        "node_embed": emb(num_nodes, H),
        "node_embed1": emb(num_nodes, 4),            # unused in forward
        "time_embed": emb(96, H),
        "week_embed": emb(7, H),
        "node_lin": lin(in_ch, H),
        "node_lin1": lin(2 * H, H),                  # unused in forward
        "attr_lin": lin(num_attrs, H),
        "attr_lin1_0": lin(num_attrs, H),
        "attr_lin1_2": lin(H, H),
        "fc1": lin(num_nodes, 256),
        "fc2": lin(256, 32),
        "fc3": lin(256, 32),
        "fc4": lin(32, 256),
        "fc5": lin(256, num_nodes),
        "gcn_lin1": lin(2 * H, H),
        "gcn_lin2": lin(2 * H, H),
        "conv1": [gat(H) for _ in range(3)],
        "conv2": [gat(H) for _ in range(3)],
    }
    lins = [lin(6 * H, H)]
    for _ in range(num_layers - 2):
        lins.append(lin(H, H))
    lins.append(lin(H, out_ch))
    p["lins"] = lins
    return p


def prepare_params(p):
    """One-time layout/dtype prep (runs once, not per forward):
      * weights -> bf16 MXU operand dtype (biases stay f32, added after the
        f32 accumulate);  VAE fc* weights stay f32 (mu/log_var feed exp()).
      * six lin_edge weights concatenated -> one (H, 6H) matmul.
      * gcn_lin1/gcn_lin2 block-diagonalised and lins[0] pre-split so the
        fused tail kernel never slices a ref."""
    H = p["node_embed"].shape[1]
    W = _wcast
    out = {
        "embed": p["embed"], "node_embed": p["node_embed"],
        "time_embed": p["time_embed"], "week_embed": p["week_embed"],
        "node_lin": (W(p["node_lin"][0]), p["node_lin"][1]),
        "attr_lin": (W(p["attr_lin"][0]), p["attr_lin"][1]),
        "attr_lin1_0": (W(p["attr_lin1_0"][0]), p["attr_lin1_0"][1]),
        "attr_lin1_2": (W(p["attr_lin1_2"][0]), p["attr_lin1_2"][1]),
    }
    for name in ("fc1", "fc2", "fc3", "fc4", "fc5"):
        out[name] = p[name]                                      # f32 (VAE)

    def conv(prm):
        return dict(Wl=W(prm["Wl"]), bl=prm["bl"], Wr=W(prm["Wr"]),
                    br=prm["br"], att=prm["att"], bias=prm["bias"])
    out["conv1"] = [conv(c) for c in p["conv1"]]
    out["conv2"] = [conv(c) for c in p["conv2"]]
    out["We_all"] = W(jnp.concatenate(
        [c["We"] for c in p["conv1"] + p["conv2"]], axis=1))

    w1, b1 = p["gcn_lin1"]
    w2, b2 = p["gcn_lin2"]
    out["Wg_src"] = W(_block_diag(w1[:H], w2[:H]))     # rows: [data|node_embed]
    out["Wg_dst"] = W(_block_diag(w1[H:], w2[H:]))
    out["bg"] = jnp.concatenate([b1, b2]).reshape(1, -1)

    L0, b0 = p["lins"][0]
    out["W0_embed"] = W(L0[0:H])
    out["W0_attr"] = W(L0[H:2 * H])
    out["W0_gx"] = W(L0[2 * H:4 * H])                  # consumes gx = [xg|x1]
    out["W0_time"] = W(L0[4 * H:5 * H])
    out["W0_week"] = W(L0[5 * H:6 * H])
    out["b0"] = b0.reshape(1, -1)
    out["lins_rest"] = [(W(w), b.reshape(1, -1)) for (w, b) in p["lins"][1:]]
    return out


# --------------------------------------------------------------------------
# RecLinear.forward
# --------------------------------------------------------------------------
def rec_linear_forward(params, index, edge_index, x, attr, cur_t, cur_w, key,
                       city="london"):
    xmin = NAN_TO_NUM_MAP[city]
    xmax = 23.91
    num_nodes, in_ch = x.shape
    H = params["node_embed"].shape[1]
    k_ratio, k_drop, k_eps = jax.random.split(key, 3)

    mask_idx = (jnp.sum(x, axis=1, keepdims=True)
                != xmin * in_ch).astype(jnp.float32)
    x_norm = (x - xmin) / (xmax - xmin)
    ratio = 0.8 + 0.4 * jax.random.uniform(k_ratio, ())
    x_norm = x_norm * ratio
    drop_idx = (jax.random.uniform(k_drop, (num_nodes, 1)) > 0.4).astype(jnp.float32)
    x_norm = (x_norm * drop_idx).T                   # (in_ch, num_nodes)

    # VAE encode / reparameterize / decode: single fused Pallas kernel.
    eps = jax.random.normal(k_eps, (in_ch, params["fc2"][0].shape[1]))
    x_rec = pallas_vae(x_norm, eps, params)
    x_rec = (x_rec / ratio).T * (xmax - xmin) + xmin
    x_rec1 = mask_idx * x + (1.0 - mask_idx) * x_rec

    # attr_lin + attr_lin1 fused (share the attr load).
    attr1, a1 = pallas_attr(attr, params)
    embed = params["embed"][index]

    # Self-loop augmentation is identical for all six conv layers; all six
    # lin_edge transforms share eattr_f via one bias-free (H, 6H) matmul.
    src_f, dst_f, eattr_f = _add_self_loops_mean(edge_index, attr1, num_nodes)
    xe_all = pallas_linear(eattr_f, params["We_all"])
    xe_list = [xe_all[:, i * H:(i + 1) * H] for i in range(6)]

    # Chain 1: node_embed table.
    h0_1 = params["node_embed"]
    c0 = params["conv1"][0]
    xl0, xr0 = pallas_gat_lin(h0_1, c0["Wl"], c0["bl"], c0["Wr"], c0["br"])
    conv1_out = _run_gat_chain(h0_1, xl0, xr0, params["conv1"], xe_list[:3],
                               src_f, dst_f, num_nodes)

    # Chain 2: node_lin + gelu fused into conv2 layer-0's lin_l/lin_r matmul.
    c0 = params["conv2"][0]
    data0, xl0, xr0 = pallas_node_gat0(x_rec1, *params["node_lin"],
                                       c0["Wl"], c0["bl"], c0["Wr"], c0["br"])
    conv2_out = _run_gat_chain(data0, xl0, xr0, params["conv2"], xe_list[3:],
                               src_f, dst_f, num_nodes)

    # Final gelu+residual of both chains -> one (N, 2H) array, two gathers.
    dn = pallas_gelu_add_pair(conv2_out, data0, conv1_out, h0_1)
    src, dst = edge_index[0], edge_index[1]
    # TODO(synk): at production E, gather these rows in-kernel (pl.ANY +
    # scalar-prefetched src/dst + manual DMA) instead of XLA gathers.
    dn_src = dn[src]
    dn_dst = dn[dst]

    time_embed = params["time_embed"][cur_t]
    week_embed = params["week_embed"][cur_w]

    # gcn_lin1 + gcn_lin2 + 6H concat + the whole `lins` MLP in one kernel.
    xf = pallas_tail(dn_src, dn_dst, embed, a1, time_embed, week_embed, params)
    return xf, x_rec


if __name__ == "__main__":
    num_nodes, num_edges, num_attrs = 64, 96, 16
    in_ch, H, out_ch, num_layers = 4, 32, 4, 3
    E = num_edges

    root = jax.random.PRNGKey(0)
    k_param, k_data, k_fwd = jax.random.split(root, 3)
    raw_params = init_params(k_param, num_edges, num_nodes, num_attrs,
                             in_ch, H, out_ch, num_layers)
    params = prepare_params(raw_params)              # one-time layout/dtype prep

    kd = jax.random.split(k_data, 6)
    index = jnp.arange(E, dtype=jnp.int32)
    src = jax.random.randint(kd[0], (E,), 0, num_nodes, dtype=jnp.int32)
    off = jax.random.randint(kd[1], (E,), 1, num_nodes, dtype=jnp.int32)
    dst = (src + off) % num_nodes                    # no self loops
    edge_index = jnp.stack([src, dst]).astype(jnp.int32)
    x = jax.random.uniform(kd[2], (num_nodes, in_ch), jnp.float32, -1.21, 23.91)
    attr = jax.random.normal(kd[3], (E, num_attrs), jnp.float32)
    cur_t = jax.random.randint(kd[4], (E,), 0, 96, dtype=jnp.int32)
    cur_w = jax.random.randint(kd[5], (E,), 0, 7, dtype=jnp.int32)

    xf, x_rec = rec_linear_forward(params, index, edge_index, x, attr,
                                   cur_t, cur_w, k_fwd, city="london")
    jax.block_until_ready((xf, x_rec))
    assert xf.shape == (E, out_ch), xf.shape
    assert x_rec.shape == (num_nodes, in_ch), x_rec.shape
    assert bool(jnp.all(jnp.isfinite(xf))) and bool(jnp.all(jnp.isfinite(x_rec)))
    print("KERNEL_OK")
</pallas_src>

<mosaic_0001>
module attributes {stable_mosaic.version = 11 : i64} {
  func.func @_probe(%arg0: i32, %arg1: memref<8x128xf32, #tpu.memory_space<vmem>>, %arg2: memref<8x128xf32, #tpu.memory_space<vmem>>) attributes {dimension_semantics = [#tpu.dimension_semantics<arbitrary>], iteration_bounds = array<i64: 1>, scalar_prefetch = 0 : i64, scratch_operands = 0 : i64, tpu.core_type = #tpu.core_type<tc>, window_params = [{pipeline_mode = #tpu.pipeline_mode<synchronous>, transform_indices = @transform_0, window_bounds = array<i64: 8, 128>}, {pipeline_mode = #tpu.pipeline_mode<synchronous>, transform_indices = @transform_1, window_bounds = array<i64: 8, 128>}]} {
    %c0 = arith.constant 0 : index
    %c0_0 = arith.constant 0 : index
    %0 = vector.load %arg1[%c0, %c0_0] : memref<8x128xf32, #tpu.memory_space<vmem>>, vector<8x128xf32>
    %c0_1 = arith.constant 0 : index
    %c0_2 = arith.constant 0 : index
    %1 = vector.load %arg2[%c0_1, %c0_2] : memref<8x128xf32, #tpu.memory_space<vmem>>, vector<8x128xf32>
    tpu.vector_store %arg2[%c0_1, %c0_2], %0 {strides = array<i32>} : memref<8x128xf32, #tpu.memory_space<vmem>>, vector<8x128xf32>,
    return
  }
  func.func @transform_0(%arg0: i32) -> (i32, i32) {
    %c0_i32 = arith.constant 0 : i32
    %c0_i32_0 = arith.constant 0 : i32
    %c0_i32_1 = arith.constant 0 : i32
    return %c0_i32, %c0_i32_0 : i32, i32
  }
  func.func @transform_1(%arg0: i32) -> (i32, i32) {
    %c0_i32 = arith.constant 0 : i32
    %c0_i32_0 = arith.constant 0 : i32
    %c0_i32_1 = arith.constant 0 : i32
    return %c0_i32, %c0_i32_0 : i32, i32
  }
}

module attributes {stable_mosaic.version = 11 : i64} {
  func.func @_vae_kernel(%arg0: i32, %arg1: memref<4x64xf32, #tpu.memory_space<vmem>>, %arg2: memref<4x32xf32, #tpu.memory_space<vmem>>, %arg3: memref<64x256xf32, #tpu.memory_space<vmem>>, %arg4: memref<1x256xf32, #tpu.memory_space<vmem>>, %arg5: memref<256x32xf32, #tpu.memory_space<vmem>>, %arg6: memref<1x32xf32, #tpu.memory_space<vmem>>, %arg7: memref<256x32xf32, #tpu.memory_space<vmem>>, %arg8: memref<1x32xf32, #tpu.memory_space<vmem>>, %arg9: memref<32x256xf32, #tpu.memory_space<vmem>>, %arg10: memref<1x256xf32, #tpu.memory_space<vmem>>, %arg11: memref<256x64xf32, #tpu.memory_space<vmem>>, %arg12: memref<1x64xf32, #tpu.memory_space<vmem>>, %arg13: memref<4x64xf32, #tpu.memory_space<vmem>>) attributes {dimension_semantics = [#tpu.dimension_semantics<parallel>], iteration_bounds = array<i64: 1>, scalar_prefetch = 0 : i64, scratch_operands = 0 : i64, tpu.core_type = #tpu.core_type<tc>, window_params = [{pipeline_mode = #tpu.pipeline_mode<synchronous>, transform_indices = @transform_0, window_bounds = array<i64: 4, 64>}, {pipeline_mode = #tpu.pipeline_mode<synchronous>, transform_indices = @transform_1, window_bounds = array<i64: 4, 32>}, {pipeline_mode = #tpu.pipeline_mode<synchronous>, transform_indices = @transform_2, window_bounds = array<i64: 64, 256>}, {pipeline_mode = #tpu.pipeline_mode<synchronous>, transform_indices = @transform_3, window_bounds = array<i64: 1, 256>}, {pipeline_mode = #tpu.pipeline_mode<synchronous>, transform_indices = @transform_4, window_bounds = array<i64: 256, 32>}, {pipeline_mode = #tpu.pipeline_mode<synchronous>, transform_indices = @transform_5, window_bounds = array<i64: 1, 32>}, {pipeline_mode = #tpu.pipeline_mode<synchronous>, transform_indices = @transform_6, window_bounds = array<i64: 256, 32>}, {pipeline_mode = #tpu.pipeline_mode<synchronous>, transform_indices = @transform_7, window_bounds = array<i64: 1, 32>}, {pipeline_mode = #tpu.pipeline_mode<synchronous>, transform_indices = @transform_8, window_bounds = array<i64: 32, 256>}, {pipeline_mode = #tpu.pipeline_mode<synchronous>, transform_indices = @transform_9, window_bounds = array<i64: 1, 256>}, {transform_indices = @transform_10, window_bounds = array<i64: 256, 64>}, {transform_indices = @transform_11, window_bounds = array<i64: 1, 64>}, {transform_indices = @transform_12, window_bounds = array<i64: 4, 64>}]} {
    %c0 = arith.constant 0 : index
    %c0_0 = arith.constant 0 : index
    %0 = vector.load %arg1[%c0, %c0_0] : memref<4x64xf32, #tpu.memory_space<vmem>>, vector<4x64xf32>
    %c0_1 = arith.constant 0 : index
    %c0_2 = arith.constant 0 : index
    %1 = vector.load %arg3[%c0_1, %c0_2] : memref<64x256xf32, #tpu.memory_space<vmem>>, vector<64x256xf32>
    %cst = arith.constant dense<0.000000e+00> : vector<4x256xf32>
    %2 = tpu.matmul %0, %1, %cst {dimension_numbers = #tpu.dot_dimension_numbers<[1], [0], [0], [1], [0, 0, 1, 1], [], []>} : vector<4x64xf32>, vector<64x256xf32>, vector<4x256xf32> -> vector<4x256xf32>
    %c0_3 = arith.constant 0 : index
    %c0_4 = arith.constant 0 : index
    %3 = vector.load %arg4[%c0_3, %c0_4] : memref<1x256xf32, #tpu.memory_space<vmem>>, vector<1x256xf32>
    %4 = vector.broadcast %3 : vector<1x256xf32> to vector<4x256xf32>
    %5 = arith.addf %2, %4 : vector<4x256xf32>
    %cst_5 = arith.constant 5.000000e-01 : f32
    %6 = vector.broadcast %cst_5 : f32 to vector<4x256xf32>
    %7 = arith.mulf %6, %5 : vector<4x256xf32>
    %cst_6 = arith.constant 4.471500e-02 : f32
    %8 = vector.broadcast %cst_6 : f32 to vector<4x256xf32>
    %9 = arith.mulf %8, %5 : vector<4x256xf32>
    %10 = arith.mulf %9, %5 : vector<4x256xf32>
    %11 = arith.mulf %10, %5 : vector<4x256xf32>
    %12 = arith.addf %5, %11 : vector<4x256xf32>
    %cst_7 = arith.constant 0.797884583 : f32
    %13 = vector.broadcast %cst_7 : f32 to vector<4x256xf32>
    %14 = arith.mulf %13, %12 : vector<4x256xf32>
    %15 = math.tanh %14 : vector<4x256xf32>
    %cst_8 = arith.constant 1.000000e+00 : f32
    %16 = vector.broadcast %cst_8 : f32 to vector<4x256xf32>
    %17 = arith.addf %16, %15 : vector<4x256xf32>
    %18 = arith.mulf %7, %17 : vector<4x256xf32>
    %c0_9 = arith.constant 0 : index
    %c0_10 = arith.constant 0 : index
    %19 = vector.load %arg5[%c0_9, %c0_10] : memref<256x32xf32, #tpu.memory_space<vmem>>, vector<256x32xf32>
    %cst_11 = arith.constant dense<0.000000e+00> : vector<4x32xf32>
    %20 = tpu.matmul %18, %19, %cst_11 {dimension_numbers = #tpu.dot_dimension_numbers<[1], [0], [0], [1], [0, 0, 1, 1], [], []>} : vector<4x256xf32>, vector<256x32xf32>, vector<4x32xf32> -> vector<4x32xf32>
    %c0_12 = arith.constant 0 : index
    %c0_13 = arith.constant 0 : index
    %21 = vector.load %arg6[%c0_12, %c0_13] : memref<1x32xf32, #tpu.memory_space<vmem>>, vector<1x32xf32>
    %22 = vector.broadcast %21 : vector<1x32xf32> to vector<4x32xf32>
    %23 = arith.addf %20, %22 : vector<4x32xf32>
    %c0_14 = arith.constant 0 : index
    %c0_15 = arith.constant 0 : index
    %24 = vector.load %arg7[%c0_14, %c0_15] : memref<256x32xf32, #tpu.memory_space<vmem>>, vector<256x32xf32>
    %cst_16 = arith.constant dense<0.000000e+00> : vector<4x32xf32>
    %25 = tpu.matmul %18, %24, %cst_16 {dimension_numbers = #tpu.dot_dimension_numbers<[1], [0], [0], [1], [0, 0, 1, 1], [], []>} : vector<4x256xf32>, vector<256x32xf32>, vector<4x32xf32> -> vector<4x32xf32>
    %c0_17 = arith.constant 0 : index
    %c0_18 = arith.constant 0 : index
    %26 = vector.load %arg8[%c0_17, %c0_18] : memref<1x32xf32, #tpu.memory_space<vmem>>, vector<1x32xf32>
    %27 = vector.broadcast %26 : vector<1x32xf32> to vector<4x32xf32>
    %28 = arith.addf %25, %27 : vector<4x32xf32>
    %c0_19 = arith.constant 0 : index
    %c0_20 = arith.constant 0 : index
    %29 = vector.load %arg2[%c0_19, %c0_20] : memref<4x32xf32, #tpu.memory_space<vmem>>, vector<4x32xf32>
    %cst_21 = arith.constant 5.000000e-01 : f32
    %30 = vector.broadcast %cst_21 : f32 to vector<4x32xf32>
    %31 = arith.mulf %30, %28 : vector<4x32xf32>
    %32 = math.exp %31 : vector<4x32xf32>
    %33 = arith.mulf %29, %32 : vector<4x32xf32>
    %34 = arith.addf %23, %33 : vector<4x32xf32>
    %c0_22 = arith.constant 0 : index
    %c0_23 = arith.constant 0 : index
    %35 = vector.load %arg9[%c0_22, %c0_23] : memref<32x256xf32, #tpu.memory_space<vmem>>, vector<32x256xf32>
    %cst_24 = arith.constant dense<0.000000e+00> : vector<4x256xf32>
    %36 = tpu.matmul %34, %35, %cst_24 {dimension_numbers = #tpu.dot_dimension_numbers<[1], [0], [0], [1], [0, 0, 1, 1], [], []>} : vector<4x32xf32>, vector<32x256xf32>, vector<4x256xf32> -> vector<4x256xf32>
    %c0_25 = arith.constant 0 : index
    %c0_26 = arith.constant 0 : index
    %37 = vector.load %arg10[%c0_25, %c0_26] : memref<1x256xf32, #tpu.memory_space<vmem>>, vector<1x256xf32>
    %38 = vector.broadcast %37 : vector<1x256xf32> to vector<4x256xf32>
    %39 = arith.addf %36, %38 : vector<4x256xf32>
    %cst_27 = arith.constant 5.000000e-01 : f32
    %40 = vector.broadcast %cst_27 : f32 to vector<4x256xf32>
    %41 = arith.mulf %40, %39 : vector<4x256xf32>
    %cst_28 = arith.constant 4.471500e-02 : f32
    %42 = vector.broadcast %cst_28 : f32 to vector<4x256xf32>
    %43 = arith.mulf %42, %39 : vector<4x256xf32>
    %44 = arith.mulf %43, %39 : vector<4x256xf32>
    %45 = arith.mulf %44, %39 : vector<4x256xf32>
    %46 = arith.addf %39, %45 : vector<4x256xf32>
    %cst_29 = arith.constant 0.797884583 : f32
    %47 = vector.broadcast %cst_29 : f32 to vector<4x256xf32>
    %48 = arith.mulf %47, %46 : vector<4x256xf32>
    %49 = math.tanh %48 : vector<4x256xf32>
    %cst_30 = arith.constant 1.000000e+00 : f32
    %50 = vector.broadcast %cst_30 : f32 to vector<4x256xf32>
    %51 = arith.addf %50, %49 : vector<4x256xf32>
    %52 = arith.mulf %41, %51 : vector<4x256xf32>
    %c0_31 = arith.constant 0 : index
    %c0_32 = arith.constant 0 : index
    %53 = vector.load %arg11[%c0_31, %c0_32] : memref<256x64xf32, #tpu.memory_space<vmem>>, vector<256x64xf32>
    %cst_33 = arith.constant dense<0.000000e+00> : vector<4x64xf32>
    %54 = tpu.matmul %52, %53, %cst_33 {dimension_numbers = #tpu.dot_dimension_numbers<[1], [0], [0], [1], [0, 0, 1, 1], [], []>} : vector<4x256xf32>, vector<256x64xf32>, vector<4x64xf32> -> vector<4x64xf32>
    %c0_34 = arith.constant 0 : index
    %c0_35 = arith.constant 0 : index
    %55 = vector.load %arg12[%c0_34, %c0_35] : memref<1x64xf32, #tpu.memory_space<vmem>>, vector<1x64xf32>
    %56 = vector.broadcast %55 : vector<1x64xf32> to vector<4x64xf32>
    %57 = arith.addf %54, %56 : vector<4x64xf32>
    %c0_36 = arith.constant 0 : index
    %c0_37 = arith.constant 0 : index
    %58 = vector.load %arg13[%c0_36, %c0_37] : memref<4x64xf32, #tpu.memory_space<vmem>>, vector<4x64xf32>
    tpu.vector_store %arg13[%c0_36, %c0_37], %57 {strides = array<i32>} : memref<4x64xf32, #tpu.memory_space<vmem>>, vector<4x64xf32>,
    return
  }
  func.func @transform_0(%arg0: i32) -> (i32, i32) {
    %c0_i32 = arith.constant 0 : i32
    %c0_i32_0 = arith.constant 0 : i32
    %c0_i32_1 = arith.constant 0 : i32
    return %c0_i32, %c0_i32_0 : i32, i32
  }
  func.func @transform_1(%arg0: i32) -> (i32, i32) {
    %c0_i32 = arith.constant 0 : i32
    %c0_i32_0 = arith.constant 0 : i32
    %c0_i32_1 = arith.constant 0 : i32
    return %c0_i32, %c0_i32_0 : i32, i32
  }
  func.func @transform_2(%arg0: i32) -> (i32, i32) {
    %c0_i32 = arith.constant 0 : i32
    %c0_i32_0 = arith.constant 0 : i32
    %c0_i32_1 = arith.constant 0 : i32
    return %c0_i32, %c0_i32_0 : i32, i32
  }
  func.func @transform_3(%arg0: i32) -> (i32, i32) {
    %c0_i32 = arith.constant 0 : i32
    %c0_i32_0 = arith.constant 0 : i32
    %c0_i32_1 = arith.constant 0 : i32
    return %c0_i32, %c0_i32_0 : i32, i32
  }
  func.func @transform_4(%arg0: i32) -> (i32, i32) {
    %c0_i32 = arith.constant 0 : i32
    %c0_i32_0 = arith.constant 0 : i32
    %c0_i32_1 = arith.constant 0 : i32
    return %c0_i32, %c0_i32_0 : i32, i32
  }
  func.func @transform_5(%arg0: i32) -> (i32, i32) {
    %c0_i32 = arith.constant 0 : i32
    %c0_i32_0 = arith.constant 0 : i32
    %c0_i32_1 = arith.constant 0 : i32
    return %c0_i32, %c0_i32_0 : i32, i32
  }
  func.func @transform_6(%arg0: i32) -> (i32, i32) {
    %c0_i32 = arith.constant 0 : i32
    %c0_i32_0 = arith.constant 0 : i32
    %c0_i32_1 = arith.constant 0 : i32
    return %c0_i32, %c0_i32_0 : i32, i32
  }
  func.func @transform_7(%arg0: i32) -> (i32, i32) {
    %c0_i32 = arith.constant 0 : i32
    %c0_i32_0 = arith.constant 0 : i32
    %c0_i32_1 = arith.constant 0 : i32
    return %c0_i32, %c0_i32_0 : i32, i32
  }
  func.func @transform_8(%arg0: i32) -> (i32, i32) {
    %c0_i32 = arith.constant 0 : i32
    %c0_i32_0 = arith.constant 0 : i32
    %c0_i32_1 = arith.constant 0 : i32
    return %c0_i32, %c0_i32_0 : i32, i32
  }
  func.func @transform_9(%arg0: i32) -> (i32, i32) {
    %c0_i32 = arith.constant 0 : i32
    %c0_i32_0 = arith.constant 0 : i32
    %c0_i32_1 = arith.constant 0 : i32
    return %c0_i32, %c0_i32_0 : i32, i32
  }
  func.func @transform_10(%arg0: i32) -> (i32, i32) {
    %c0_i32 = arith.constant 0 : i32
    %c0_i32_0 = arith.constant 0 : i32
    return %c0_i32, %arg0 : i32, i32
  }
  func.func @transform_11(%arg0: i32) -> (i32, i32) {
    %c0_i32 = arith.constant 0 : i32
    %c0_i32_0 = arith.constant 0 : i32
    return %c0_i32, %arg0 : i32, i32
  }
  func.func @transform_12(%arg0: i32) -> (i32, i32) {
    %c0_i32 = arith.constant 0 : i32
    %c0_i32_0 = arith.constant 0 : i32
    return %c0_i32, %arg0 : i32, i32
  }
}

</mosaic_0001>

<llo_original>
// kernel: tpu_custom_call.1
$region0: #{tpu_custom_call.1}
  #allocation0 [shape = 'u32[]', space=smem, size = 0x4, offset = 0x4, fixed_abs, tag = 'smem constant byte address 0x4 - core index']
  #allocation1 [shape = 'u32[72,128]{1,0:T(1,128)}', space=vmem, size = 0x9000, scoped, tag = 'internal scratch']
  %s0 = inlined_call_operand.hbm [shape: f32[8,128], index: 0, kind: input, shape index: {}]
  %s1 = inlined_call_operand.hbm [shape: f32[8,128], index: 1, kind: output, shape index: {}]
  %s2 = sld [smem:[#allocation0]]
  $region18: #{tpu_custom_call.1} parent=0
    _
  %s4 = ssub.s32 1, %s2
  %s5 = scalar_select 0, %s4, %s2
  $region1: #{tpu_custom_call.1} parent=0
    #allocation2 [shape = 'u8[4096]{0}', space=vmem, size = 0x1000, scoped, tag = 'input window, operand 0, single buffered']
    #allocation3 [shape = 's32[1]{0}', space=sflag, size = 0x4, scoped, tag = 'scoped memory for tpu_custom_call.1']
    #allocation4 [shape = 's32[1]{0}', space=sflag, size = 0x4, scoped, tag = 'scoped memory for tpu_custom_call.1']
    #allocation5 [shape = 'u8[4096]{0}', space=vmem, size = 0x1000, scoped, tag = 'output window, operand 0, single buffered']
    %6 = vsyncpa [#allocation3], 0
    %7 = vsyncpa [#allocation4], 0
    // Predicated region
    $region2: #{tpu_custom_call.1} parent=1 // pred_check
      _
    $region3: #{tpu_custom_call.1} parent=1 // pred_check_branch
      %9 = sbr.rel (0) target = $region5
    $region4: #{tpu_custom_call.1} parent=1 // pred_region
      %11 = vsyncadd [#allocation3], 0
      %s13 = sshll.u32 %s0, 4
      %s14 = int_to_ptr.hbm [resolvable:$true] %s13
      %s15 = sshll.u32 [#allocation2], 4
      %s16 = int_to_ptr.vmem [resolvable:$true] %s15
      %18 = dma.hbm_to_vmem [thread:$0]  %s14, 128, %s16, [#allocation3]
    $region5: #{tpu_custom_call.1} parent=1 // pred_fallthru
      _
    // Predicated region
    $region6: #{tpu_custom_call.1} parent=1 // pred_check
      _
    $region7: #{tpu_custom_call.1} parent=1 // pred_check_branch
      %20 = sbr.rel (0) target = $region9
    $region8: #{tpu_custom_call.1} parent=1 // pred_region
      %22 = dma.done [#allocation3], 128
    $region9: #{tpu_custom_call.1} parent=1 // pred_fallthru
      _
    %v23 = vld [vmem:[#allocation2] sm:$0xff]
    %24 = vst [vmem:[#allocation5] sm:$0xff] %v23
    // Predicated region
    $region10: #{tpu_custom_call.1} parent=1 // pred_check
      _
    $region11: #{tpu_custom_call.1} parent=1 // pred_check_branch
      %26 = sbr.rel (0) target = $region13
    $region12: #{tpu_custom_call.1} parent=1 // pred_region
      %28 = vsyncadd [#allocation4], 0
      %s30 = sshll.u32 [#allocation5], 4
      %s31 = int_to_ptr.vmem [resolvable:$true] %s30
      %s32 = sshll.u32 %s1, 4
      %s33 = int_to_ptr.hbm [resolvable:$true] %s32
      %35 = dma.vmem_to_hbm [thread:$0]  %s31, 128, %s33, [#allocation4]
    $region13: #{tpu_custom_call.1} parent=1 // pred_fallthru
      _
    // Predicated region
    $region14: #{tpu_custom_call.1} parent=1 // pred_check
      _
    $region15: #{tpu_custom_call.1} parent=1 // pred_check_branch
      %37 = sbr.rel (0) target = $region17
    $region16: #{tpu_custom_call.1} parent=1 // pred_region
      %39 = dma.done [#allocation4], 128
    $region17: #{tpu_custom_call.1} parent=1 // pred_fallthru
      _
    %40 = vsyncpa [#allocation3], 1
    %41 = vsyncpa [#allocation4], 1

// kernel: tpu_custom_call.1
$region0: #{tpu_custom_call.1}
  #allocation0 [shape = 'u32[]', space=smem, size = 0x4, offset = 0x4, fixed_abs, tag = 'smem constant byte address 0x4 - core index']
  #allocation1 [shape = 'u32[72,128]{1,0:T(1,128)}', space=vmem, size = 0x9000, scoped, tag = 'internal scratch']
  %s0 = inlined_call_operand.vmem [shape: f32[4,64], index: 0, kind: input, shape index: {}]
  %s1 = inlined_call_operand.vmem [shape: f32[4,32], index: 1, kind: input, shape index: {}]
  %s2 = inlined_call_operand.vmem [shape: f32[64,256], index: 2, kind: input, shape index: {}]
  %s3 = inlined_call_operand.vmem [shape: f32[1,256], index: 3, kind: input, shape index: {}]
  %s4 = inlined_call_operand.vmem [shape: f32[256,32], index: 4, kind: input, shape index: {}]
  %s5 = inlined_call_operand.vmem [shape: f32[1,32], index: 5, kind: input, shape index: {}]
  %s6 = inlined_call_operand.vmem [shape: f32[256,32], index: 6, kind: input, shape index: {}]
  %s7 = inlined_call_operand.vmem [shape: f32[1,32], index: 7, kind: input, shape index: {}]
  %s8 = inlined_call_operand.vmem [shape: f32[32,256], index: 8, kind: input, shape index: {}]
  %s9 = inlined_call_operand.vmem [shape: f32[1,256], index: 9, kind: input, shape index: {}]
  %s10 = inlined_call_operand.vmem [shape: f32[256,64], index: 10, kind: input, shape index: {}]
  %s11 = inlined_call_operand.vmem [shape: f32[1,64], index: 11, kind: input, shape index: {}]
  %s12 = inlined_call_operand.hbm [shape: f32[4,64], index: 12, kind: output, shape index: {}]
  %s13 = sld [smem:[#allocation0]]
  $region58: #{tpu_custom_call.1} parent=0
    _
  %s15 = ssub.s32 1, %s13
  %s16 = scalar_select 0, %s15, %s13
  $region1: #{tpu_custom_call.1} parent=0
    #allocation2 [shape = 'u8[2048]{0}', space=vmem, size = 0x800, scoped, tag = 'output window, operand 0, single buffered']
    #allocation3 [shape = 's32[1]{0}', space=sflag, size = 0x4, scoped, tag = 'scoped memory for tpu_custom_call.1']
    %17 = vsyncpa [#allocation3], 0
    // Predicated region
    $region2: #{tpu_custom_call.1} parent=1 // pred_check
      _
    $region3: #{tpu_custom_call.1} parent=1 // pred_check_branch
      %19 = sbr.rel (0) target = $region5
    $region4: #{tpu_custom_call.1} parent=1 // pred_region
      _
    $region5: #{tpu_custom_call.1} parent=1 // pred_fallthru
      _
    // Predicated region
    $region6: #{tpu_custom_call.1} parent=1 // pred_check
      _
    $region7: #{tpu_custom_call.1} parent=1 // pred_check_branch
      %21 = sbr.rel (0) target = $region9
    $region8: #{tpu_custom_call.1} parent=1 // pred_region
      _
    $region9: #{tpu_custom_call.1} parent=1 // pred_fallthru
      _
    // Predicated region
    $region10: #{tpu_custom_call.1} parent=1 // pred_check
      _
    $region11: #{tpu_custom_call.1} parent=1 // pred_check_branch
      %23 = sbr.rel (0) target = $region13
    $region12: #{tpu_custom_call.1} parent=1 // pred_region
      _
    $region13: #{tpu_custom_call.1} parent=1 // pred_fallthru
      _
    // Predicated region
    $region14: #{tpu_custom_call.1} parent=1 // pred_check
      _
    $region15: #{tpu_custom_call.1} parent=1 // pred_check_branch
      %25 = sbr.rel (0) target = $region17
    $region16: #{tpu_custom_call.1} parent=1 // pred_region
      _
    $region17: #{tpu_custom_call.1} parent=1 // pred_fallthru
      _
    // Predicated region
    $region18: #{tpu_custom_call.1} parent=1 // pred_check
      _
    $region19: #{tpu_custom_call.1} parent=1 // pred_check_branch
      %27 = sbr.rel (0) target = $region21
    $region20: #{tpu_custom_call.1} parent=1 // pred_region
      _
    $region21: #{tpu_custom_call.1} parent=1 // pred_fallthru
      _
    // Predicated region
    $region22: #{tpu_custom_call.1} parent=1 // pred_check
      _
    $region23: #{tpu_custom_call.1} parent=1 // pred_check_branch
      %29 = sbr.rel (0) target = $region25
    $region24: #{tpu_custom_call.1} parent=1 // pred_region
      _
    $region25: #{tpu_custom_call.1} parent=1 // pred_fallthru
      _
    // Predicated region
    $region26: #{tpu_custom_call.1} parent=1 // pred_check
      _
    $region27: #{tpu_custom_call.1} parent=1 // pred_check_branch
      %31 = sbr.rel (0) target = $region29
    $region28: #{tpu_custom_call.1} parent=1 // pred_region
      _
    $region29: #{tpu_custom_call.1} parent=1 // pred_fallthru
      _
    // Predicated region
    $region30: #{tpu_custom_call.1} parent=1 // pred_check
      _
    $region31: #{tpu_custom_call.1} parent=1 // pred_check_branch
      %33 = sbr.rel (0) target = $region33
    $region32: #{tpu_custom_call.1} parent=1 // pred_region
      _
    $region33: #{tpu_custom_call.1} parent=1 // pred_fallthru
      _
    // Predicated region
    $region34: #{tpu_custom_call.1} parent=1 // pred_check
      _
    $region35: #{tpu_custom_call.1} parent=1 // pred_check_branch
      %35 = sbr.rel (0) target = $region37
    $region36: #{tpu_custom_call.1} parent=1 // pred_region
      _
    $region37: #{tpu_custom_call.1} parent=1 // pred_fallthru
      _
    // Predicated region
    $region38: #{tpu_custom_call.1} parent=1 // pred_check
      _
    $region39: #{tpu_custom_call.1} parent=1 // pred_check_branch
      %37 = sbr.rel (0) target = $region41
    $region40: #{tpu_custom_call.1} parent=1 // pred_region
      _
    $region41: #{tpu_custom_call.1} parent=1 // pred_fallthru
      _
    // Predicated region
    $region42: #{tpu_custom_call.1} parent=1 // pred_check
      _
    $region43: #{tpu_custom_call.1} parent=1 // pred_check_branch
      %39 = sbr.rel (0) target = $region45
    $region44: #{tpu_custom_call.1} parent=1 // pred_region
      _
    $region45: #{tpu_custom_call.1} parent=1 // pred_fallthru
      _
    // Predicated region
    $region46: #{tpu_custom_call.1} parent=1 // pred_check
      _
    $region47: #{tpu_custom_call.1} parent=1 // pred_check_branch
      %41 = sbr.rel (0) target = $region49
    $region48: #{tpu_custom_call.1} parent=1 // pred_region
      _
    $region49: #{tpu_custom_call.1} parent=1 // pred_fallthru
      _
    %v42 = vld [vmem:[%s0] sm:$0xf]
    %v43 = vld [vmem:[%s2] sm:$0xff]
    %v44 = vld [vmem:[%s2 + $0x8] sm:$0xff]
    %v45 = vld [vmem:[%s2 + $0x10] sm:$0xff]
    %v46 = vld [vmem:[%s2 + $0x18] sm:$0xff]
    %v47 = vld [vmem:[%s2 + $0x20] sm:$0xff]
    %v48 = vld [vmem:[%s2 + $0x28] sm:$0xff]
    %v49 = vld [vmem:[%s2 + $0x30] sm:$0xff]
    %v50 = vld [vmem:[%s2 + $0x38] sm:$0xff]
    %v51 = vld [vmem:[%s2 + $0x40] sm:$0xff]
    %v52 = vld [vmem:[%s2 + $0x48] sm:$0xff]
    %v53 = vld [vmem:[%s2 + $0x50] sm:$0xff]
    %v54 = vld [vmem:[%s2 + $0x58] sm:$0xff]
    %v55 = vld [vmem:[%s2 + $0x60] sm:$0xff]
    %v56 = vld [vmem:[%s2 + $0x68] sm:$0xff]
    %v57 = vld [vmem:[%s2 + $0x70] sm:$0xff]
    %v58 = vld [vmem:[%s2 + $0x78] sm:$0xff]
    %v59 = vld [vmem:[%s3] sm:$0x3]
    %v61 = vperm.slane %v59, 0
    %v62 = vperm.slane %v59, 1
    %vm65 = vcmask 523264
    %v67 = vsel %vm65, %v42, 0
    %69 = vmatpush.msra.mxu0 0.0
    %70 = vmatpush.msra.mxu0 0.0
    %71 = vmatpush.msra.mxu0 0.0
    %72 = vmatpush.msra.mxu0 0.0
    %73 = vmatpush.msra.mxu0 0.0
    %74 = vmatpush.msra.mxu0 0.0
    %75 = vmatpush.msra.mxu0 0.0
    %76 = vmatpush.msra.mxu0 0.0
    %77 = vmatpush.msra.mxu0 %v57
    %78 = vmatpush.msra.mxu0 %v55
    %79 = vmatpush.msra.mxu0 %v53
    %80 = vmatpush.msra.mxu0 %v51
    %81 = vmatpush.msra.mxu0 %v49
    %82 = vmatpush.msra.mxu0 %v47
    %83 = vmatpush.msra.mxu0 %v45
    %84 = vmatpush.msra.mxu0 %v43
    %85 = vmatmul.f32.gmra.mxu0 %v67
    %v86 = vpop.f32.mrf.mxu0
    %v87 = vadd.f32 %v61, %v86
    %88 = vdwg.mxu0
    %89 = vmatpush.msra.mxu0 0.0
    %90 = vmatpush.msra.mxu0 0.0
    %91 = vmatpush.msra.mxu0 0.0
    %92 = vmatpush.msra.mxu0 0.0
    %93 = vmatpush.msra.mxu0 0.0
    %94 = vmatpush.msra.mxu0 0.0
    %95 = vmatpush.msra.mxu0 0.0
    %96 = vmatpush.msra.mxu0 0.0
    %97 = vmatpush.msra.mxu0 %v58
    %98 = vmatpush.msra.mxu0 %v56
    %99 = vmatpush.msra.mxu0 %v54
    %100 = vmatpush.msra.mxu0 %v52
    %101 = vmatpush.msra.mxu0 %v50
    %102 = vmatpush.msra.mxu0 %v48
    %103 = vmatpush.msra.mxu0 %v46
    %104 = vmatpush.msra.mxu0 %v44
    %105 = vmatmul.f32.gmra.mxu0 %v67
    %v106 = vpop.f32.mrf.mxu0
    %v107 = vadd.f32 %v62, %v106
    %108 = vdwg.mxu0
    %v109 = vmul.f32 %v87, 0.5
    %v110 = vmul.f32 %v107, 0.5
    %v111 = vmul.f32 %v87, 0.044715
    %v112 = vmul.f32 %v107, 0.044715
    %v113 = vmul.f32 %v111, %v87
    %v114 = vmul.f32 %v112, %v107
    %v115 = vmul.f32 %v113, %v87
    %v116 = vmul.f32 %v114, %v107
    %v117 = vadd.f32 %v87, %v115
    %v118 = vadd.f32 %v107, %v116
    %v119 = vmul.f32 %v117, 0.7978846
    %v120 = vmul.f32 %v118, 0.7978846
    %v121 = vtanh.pop %v119
    %v122 = vtanh.pop %v120
    %v123 = vadd.f32 %v121, 1.0
    %v124 = vadd.f32 %v122, 1.0
    %v125 = vmul.f32 %v109, %v123
    %v126 = vmul.f32 %v110, %v124
    %v127 = vld [vmem:[%s4] sm:$0xff]
    %v128 = vld [vmem:[%s4 + $0x8] sm:$0xff]
    %v129 = vld [vmem:[%s4 + $0x10] sm:$0xff]
    %v130 = vld [vmem:[%s4 + $0x18] sm:$0xff]
    %v131 = vld [vmem:[%s4 + $0x20] sm:$0xff]
    %v132 = vld [vmem:[%s4 + $0x28] sm:$0xff]
    %v133 = vld [vmem:[%s4 + $0x30] sm:$0xff]
    %v134 = vld [vmem:[%s4 + $0x38] sm:$0xff]
    %v135 = vld [vmem:[%s4 + $0x40] sm:$0xff]
    %v136 = vld [vmem:[%s4 + $0x48] sm:$0xff]
    %v137 = vld [vmem:[%s4 + $0x50] sm:$0xff]
    %v138 = vld [vmem:[%s4 + $0x58] sm:$0xff]
    %v139 = vld [vmem:[%s4 + $0x60] sm:$0xff]
    %v140 = vld [vmem:[%s4 + $0x68] sm:$0xff]
    %v141 = vld [vmem:[%s4 + $0x70] sm:$0xff]
    %v142 = vld [vmem:[%s4 + $0x78] sm:$0xff]
    %v143 = vld [vmem:[%s4 + $0x80] sm:$0xff]
    %v144 = vld [vmem:[%s4 + $0x88] sm:$0xff]
    %v145 = vld [vmem:[%s4 + $0x90] sm:$0xff]
    %v146 = vld [vmem:[%s4 + $0x98] sm:$0xff]
    %v147 = vld [vmem:[%s4 + $0xa0] sm:$0xff]
    %v148 = vld [vmem:[%s4 + $0xa8] sm:$0xff]
    %v149 = vld [vmem:[%s4 + $0xb0] sm:$0xff]
    %v150 = vld [vmem:[%s4 + $0xb8] sm:$0xff]
    %v151 = vld [vmem:[%s4 + $0xc0] sm:$0xff]
    %v152 = vld [vmem:[%s4 + $0xc8] sm:$0xff]
    %v153 = vld [vmem:[%s4 + $0xd0] sm:$0xff]
    %v154 = vld [vmem:[%s4 + $0xd8] sm:$0xff]
    %v155 = vld [vmem:[%s4 + $0xe0] sm:$0xff]
    %v156 = vld [vmem:[%s4 + $0xe8] sm:$0xff]
    %v157 = vld [vmem:[%s4 + $0xf0] sm:$0xff]
    %v158 = vld [vmem:[%s4 + $0xf8] sm:$0xff]
    %v159 = vld [vmem:[%s5] sm:$0x1]
    %v161 = vperm.slane %v159, 0
    %163 = vmatpush.msra.mxu0 %v142
    %164 = vmatpush.msra.mxu0 %v141
    %165 = vmatpush.msra.mxu0 %v140
    %166 = vmatpush.msra.mxu0 %v139
    %167 = vmatpush.msra.mxu0 %v138
    %168 = vmatpush.msra.mxu0 %v137
    %169 = vmatpush.msra.mxu0 %v136
    %170 = vmatpush.msra.mxu0 %v135
    %171 = vmatpush.msra.mxu0 %v134
    %172 = vmatpush.msra.mxu0 %v133
    %173 = vmatpush.msra.mxu0 %v132
    %174 = vmatpush.msra.mxu0 %v131
    %175 = vmatpush.msra.mxu0 %v130
    %176 = vmatpush.msra.mxu0 %v129
    %177 = vmatpush.msra.mxu0 %v128
    %178 = vmatpush.msra.mxu0 %v127
    %179 = vmatmul.f32.gmra.mxu0 %v125
    %v180 = vpop.f32.mrf.mxu0
    %v181 = vadd.f32 %v161, %v180
    %182 = vdwg.mxu0
    %183 = vmatpush.msra.mxu0 %v158
    %184 = vmatpush.msra.mxu0 %v157
    %185 = vmatpush.msra.mxu0 %v156
    %186 = vmatpush.msra.mxu0 %v155
    %187 = vmatpush.msra.mxu0 %v154
    %188 = vmatpush.msra.mxu0 %v153
    %189 = vmatpush.msra.mxu0 %v152
    %190 = vmatpush.msra.mxu0 %v151
    %191 = vmatpush.msra.mxu0 %v150
    %192 = vmatpush.msra.mxu0 %v149
    %193 = vmatpush.msra.mxu0 %v148
    %194 = vmatpush.msra.mxu0 %v147
    %195 = vmatpush.msra.mxu0 %v146
    %196 = vmatpush.msra.mxu0 %v145
    %197 = vmatpush.msra.mxu0 %v144
    %198 = vmatpush.msra.mxu0 %v143
    %199 = vmatmul.f32.gmra.mxu0 %v126
    %v200 = vpop.f32.mrf.mxu0
    %v201 = vadd.f32 %v181, %v200
    %202 = vdwg.mxu0
    %v203 = vld [vmem:[%s6] sm:$0xff]
    %v204 = vld [vmem:[%s6 + $0x8] sm:$0xff]
    %v205 = vld [vmem:[%s6 + $0x10] sm:$0xff]
    %v206 = vld [vmem:[%s6 + $0x18] sm:$0xff]
    %v207 = vld [vmem:[%s6 + $0x20] sm:$0xff]
    %v208 = vld [vmem:[%s6 + $0x28] sm:$0xff]
    %v209 = vld [vmem:[%s6 + $0x30] sm:$0xff]
    %v210 = vld [vmem:[%s6 + $0x38] sm:$0xff]
    %v211 = vld [vmem:[%s6 + $0x40] sm:$0xff]
    %v212 = vld [vmem:[%s6 + $0x48] sm:$0xff]
    %v213 = vld [vmem:[%s6 + $0x50] sm:$0xff]
    %v214 = vld [vmem:[%s6 + $0x58] sm:$0xff]
    %v215 = vld [vmem:[%s6 + $0x60] sm:$0xff]
    %v216 = vld [vmem:[%s6 + $0x68] sm:$0xff]
    %v217 = vld [vmem:[%s6 + $0x70] sm:$0xff]
    %v218 = vld [vmem:[%s6 + $0x78] sm:$0xff]
    %v219 = vld [vmem:[%s6 + $0x80] sm:$0xff]
    %v220 = vld [vmem:[%s6 + $0x88] sm:$0xff]
    %v221 = vld [vmem:[%s6 + $0x90] sm:$0xff]
    %v222 = vld [vmem:[%s6 + $0x98] sm:$0xff]
    %v223 = vld [vmem:[%s6 + $0xa0] sm:$0xff]
    %v224 = vld [vmem:[%s6 + $0xa8] sm:$0xff]
    %v225 = vld [vmem:[%s6 + $0xb0] sm:$0xff]
    %v226 = vld [vmem:[%s6 + $0xb8] sm:$0xff]
    %v227 = vld [vmem:[%s6 + $0xc0] sm:$0xff]
    %v228 = vld [vmem:[%s6 + $0xc8] sm:$0xff]
    %v229 = vld [vmem:[%s6 + $0xd0] sm:$0xff]
    %v230 = vld [vmem:[%s6 + $0xd8] sm:$0xff]
    %v231 = vld [vmem:[%s6 + $0xe0] sm:$0xff]
    %v232 = vld [vmem:[%s6 + $0xe8] sm:$0xff]
    %v233 = vld [vmem:[%s6 + $0xf0] sm:$0xff]
    %v234 = vld [vmem:[%s6 + $0xf8] sm:$0xff]
    %v235 = vld [vmem:[%s7] sm:$0x1]
    %v237 = vperm.slane %v235, 0
    %239 = vmatpush.msra.mxu0 %v218
    %240 = vmatpush.msra.mxu0 %v217
    %241 = vmatpush.msra.mxu0 %v216
    %242 = vmatpush.msra.mxu0 %v215
    %243 = vmatpush.msra.mxu0 %v214
    %244 = vmatpush.msra.mxu0 %v213
    %245 = vmatpush.msra.mxu0 %v212
    %246 = vmatpush.msra.mxu0 %v211
    %247 = vmatpush.msra.mxu0 %v210
    %248 = vmatpush.msra.mxu0 %v209
    %249 = vmatpush.msra.mxu0 %v208
    %250 = vmatpush.msra.mxu0 %v207
    %251 = vmatpush.msra.mxu0 %v206
    %252 = vmatpush.msra.mxu0 %v205
    %253 = vmatpush.msra.mxu0 %v204
    %254 = vmatpush.msra.mxu0 %v203
    %255 = vmatmul.f32.gmra.mxu0 %v125
    %v256 = vpop.f32.mrf.mxu0
    %v257 = vadd.f32 %v237, %v256
    %258 = vdwg.mxu0
    %259 = vmatpush.msra.mxu0 %v234
    %260 = vmatpush.msra.mxu0 %v233
    %261 = vmatpush.msra.mxu0 %v232
    %262 = vmatpush.msra.mxu0 %v231
    %263 = vmatpush.msra.mxu0 %v230
    %264 = vmatpush.msra.mxu0 %v229
    %265 = vmatpush.msra.mxu0 %v228
    %266 = vmatpush.msra.mxu0 %v227
    %267 = vmatpush.msra.mxu0 %v226
    %268 = vmatpush.msra.mxu0 %v225
    %269 = vmatpush.msra.mxu0 %v224
    %270 = vmatpush.msra.mxu0 %v223
    %271 = vmatpush.msra.mxu0 %v222
    %272 = vmatpush.msra.mxu0 %v221
    %273 = vmatpush.msra.mxu0 %v220
    %274 = vmatpush.msra.mxu0 %v219
    %275 = vmatmul.f32.gmra.mxu0 %v126
    %v276 = vpop.f32.mrf.mxu0
    %v277 = vadd.f32 %v257, %v276
    %278 = vdwg.mxu0
    %v279 = vld [vmem:[%s1] sm:$0xf]
    %v280 = vmul.f32 %v277, 0.5
    %v281 = vmul.f32 %v280, 1.442695
    %v282 = vpow.pop %v281
    %v283 = vmul.f32 %v279, %v282
    %v284 = vadd.f32 %v201, %v283
    %v285 = vld [vmem:[%s8] sm:$0xff]
    %v286 = vld [vmem:[%s8 + $0x8] sm:$0xff]
    %v287 = vld [vmem:[%s8 + $0x10] sm:$0xff]
    %v288 = vld [vmem:[%s8 + $0x18] sm:$0xff]
    %v289 = vld [vmem:[%s8 + $0x20] sm:$0xff]
    %v290 = vld [vmem:[%s8 + $0x28] sm:$0xff]
    %v291 = vld [vmem:[%s8 + $0x30] sm:$0xff]
    %v292 = vld [vmem:[%s8 + $0x38] sm:$0xff]
    %v293 = vld [vmem:[%s9] sm:$0x3]
    %v295 = vperm.slane %v293, 0
    %v296 = vperm.slane %v293, 1
    %vm299 = vcmask 261120
    %v301 = vsel %vm299, %v284, 0
    %303 = vmatpush.msra.mxu0 0.0
    %304 = vmatpush.msra.mxu0 0.0
    %305 = vmatpush.msra.mxu0 0.0
    %306 = vmatpush.msra.mxu0 0.0
    %307 = vmatpush.msra.mxu0 0.0
    %308 = vmatpush.msra.mxu0 0.0
    %309 = vmatpush.msra.mxu0 0.0
    %310 = vmatpush.msra.mxu0 0.0
    %311 = vmatpush.msra.mxu0 0.0
    %312 = vmatpush.msra.mxu0 0.0
    %313 = vmatpush.msra.mxu0 0.0
    %314 = vmatpush.msra.mxu0 0.0
    %315 = vmatpush.msra.mxu0 %v291
    %316 = vmatpush.msra.mxu0 %v289
    %317 = vmatpush.msra.mxu0 %v287
    %318 = vmatpush.msra.mxu0 %v285
    %319 = vmatmul.f32.gmra.mxu0 %v301
    %v320 = vpop.f32.mrf.mxu0
    %v321 = vadd.f32 %v295, %v320
    %322 = vdwg.mxu0
    %323 = vmatpush.msra.mxu0 0.0
    %324 = vmatpush.msra.mxu0 0.0
    %325 = vmatpush.msra.mxu0 0.0
    %326 = vmatpush.msra.mxu0 0.0
    %327 = vmatpush.msra.mxu0 0.0
    %328 = vmatpush.msra.mxu0 0.0
    %329 = vmatpush.msra.mxu0 0.0
    %330 = vmatpush.msra.mxu0 0.0
    %331 = vmatpush.msra.mxu0 0.0
    %332 = vmatpush.msra.mxu0 0.0
    %333 = vmatpush.msra.mxu0 0.0
    %334 = vmatpush.msra.mxu0 0.0
    %335 = vmatpush.msra.mxu0 %v292
    %336 = vmatpush.msra.mxu0 %v290
    %337 = vmatpush.msra.mxu0 %v288
    %338 = vmatpush.msra.mxu0 %v286
    %339 = vmatmul.f32.gmra.mxu0 %v301
    %v340 = vpop.f32.mrf.mxu0
    %v341 = vadd.f32 %v296, %v340
    %342 = vdwg.mxu0
    %v343 = vmul.f32 %v321, 0.5
    %v344 = vmul.f32 %v341, 0.5
    %v345 = vmul.f32 %v321, 0.044715
    %v346 = vmul.f32 %v341, 0.044715
    %v347 = vmul.f32 %v345, %v321
    %v348 = vmul.f32 %v346, %v341
    %v349 = vmul.f32 %v347, %v321
    %v350 = vmul.f32 %v348, %v341
    %v351 = vadd.f32 %v321, %v349
    %v352 = vadd.f32 %v341, %v350
    %v353 = vmul.f32 %v351, 0.7978846
    %v354 = vmul.f32 %v352, 0.7978846
    %v355 = vtanh.pop %v353
    %v356 = vtanh.pop %v354
    %v357 = vadd.f32 %v355, 1.0
    %v358 = vadd.f32 %v356, 1.0
    %v359 = vmul.f32 %v343, %v357
    %v360 = vmul.f32 %v344, %v358
    %v361 = vld [vmem:[%s10] sm:$0xff]
    %v362 = vld [vmem:[%s10 + $0x8] sm:$0xff]
    %v363 = vld [vmem:[%s10 + $0x10] sm:$0xff]
    %v364 = vld [vmem:[%s10 + $0x18] sm:$0xff]
    %v365 = vld [vmem:[%s10 + $0x20] sm:$0xff]
    %v366 = vld [vmem:[%s10 + $0x28] sm:$0xff]
    %v367 = vld [vmem:[%s10 + $0x30] sm:$0xff]
    %v368 = vld [vmem:[%s10 + $0x38] sm:$0xff]
    %v369 = vld [vmem:[%s10 + $0x40] sm:$0xff]
    %v370 = vld [vmem:[%s10 + $0x48] sm:$0xff]
    %v371 = vld [vmem:[%s10 + $0x50] sm:$0xff]
    %v372 = vld [vmem:[%s10 + $0x58] sm:$0xff]
    %v373 = vld [vmem:[%s10 + $0x60] sm:$0xff]
    %v374 = vld [vmem:[%s10 + $0x68] sm:$0xff]
    %v375 = vld [vmem:[%s10 + $0x70] sm:$0xff]
    %v376 = vld [vmem:[%s10 + $0x78] sm:$0xff]
    %v377 = vld [vmem:[%s10 + $0x80] sm:$0xff]
    %v378 = vld [vmem:[%s10 + $0x88] sm:$0xff]
    %v379 = vld [vmem:[%s10 + $0x90] sm:$0xff]
    %v380 = vld [vmem:[%s10 + $0x98] sm:$0xff]
    %v381 = vld [vmem:[%s10 + $0xa0] sm:$0xff]
    %v382 = vld [vmem:[%s10 + $0xa8] sm:$0xff]
    %v383 = vld [vmem:[%s10 + $0xb0] sm:$0xff]
    %v384 = vld [vmem:[%s10 + $0xb8] sm:$0xff]
    %v385 = vld [vmem:[%s10 + $0xc0] sm:$0xff]
    %v386 = vld [vmem:[%s10 + $0xc8] sm:$0xff]
    %v387 = vld [vmem:[%s10 + $0xd0] sm:$0xff]
    %v388 = vld [vmem:[%s10 + $0xd8] sm:$0xff]
    %v389 = vld [vmem:[%s10 + $0xe0] sm:$0xff]
    %v390 = vld [vmem:[%s10 + $0xe8] sm:$0xff]
    %v391 = vld [vmem:[%s10 + $0xf0] sm:$0xff]
    %v392 = vld [vmem:[%s10 + $0xf8] sm:$0xff]
    %v393 = vld [vmem:[%s11] sm:$0x1]
    %v395 = vperm.slane %v393, 0
    %397 = vmatpush.msra.mxu0 %v376
    %398 = vmatpush.msra.mxu0 %v375
    %399 = vmatpush.msra.mxu0 %v374
    %400 = vmatpush.msra.mxu0 %v373
    %401 = vmatpush.msra.mxu0 %v372
    %402 = vmatpush.msra.mxu0 %v371
    %403 = vmatpush.msra.mxu0 %v370
    %404 = vmatpush.msra.mxu0 %v369
    %405 = vmatpush.msra.mxu0 %v368
    %406 = vmatpush.msra.mxu0 %v367
    %407 = vmatpush.msra.mxu0 %v366
    %408 = vmatpush.msra.mxu0 %v365
    %409 = vmatpush.msra.mxu0 %v364
    %410 = vmatpush.msra.mxu0 %v363
    %411 = vmatpush.msra.mxu0 %v362
    %412 = vmatpush.msra.mxu0 %v361
    %413 = vmatmul.f32.gmra.mxu0 %v359
    %v414 = vpop.f32.mrf.mxu0
    %v415 = vadd.f32 %v395, %v414
    %416 = vdwg.mxu0
    %417 = vmatpush.msra.mxu0 %v392
    %418 = vmatpush.msra.mxu0 %v391
    %419 = vmatpush.msra.mxu0 %v390
    %420 = vmatpush.msra.mxu0 %v389
    %421 = vmatpush.msra.mxu0 %v388
    %422 = vmatpush.msra.mxu0 %v387
    %423 = vmatpush.msra.mxu0 %v386
    %424 = vmatpush.msra.mxu0 %v385
    %425 = vmatpush.msra.mxu0 %v384
    %426 = vmatpush.msra.mxu0 %v383
    %427 = vmatpush.msra.mxu0 %v382
    %428 = vmatpush.msra.mxu0 %v381
    %429 = vmatpush.msra.mxu0 %v380
    %430 = vmatpush.msra.mxu0 %v379
    %431 = vmatpush.msra.mxu0 %v378
    %432 = vmatpush.msra.mxu0 %v377
    %433 = vmatmul.f32.gmra.mxu0 %v360
    %v434 = vpop.f32.mrf.mxu0
    %v435 = vadd.f32 %v415, %v434
    %436 = vdwg.mxu0
    %vm437 = vcmask 519168
    %438 = vst.msk [vmem:[#allocation2] sm:$0xf] %vm437, %v435
    // Predicated region
    $region50: #{tpu_custom_call.1} parent=1 // pred_check
      _
    $region51: #{tpu_custom_call.1} parent=1 // pred_check_branch
      %440 = sbr.rel (0) target = $region53
    $region52: #{tpu_custom_call.1} parent=1 // pred_region
      %442 = vsyncadd [#allocation3], 0
      %s444 = sshll.u32 [#allocation2], 4
      %s445 = int_to_ptr.vmem [resolvable:$true] %s444
      %s446 = sshll.u32 %s12, 4
      %s447 = int_to_ptr.hbm [resolvable:$true] %s446
      %449 = dma.vmem_to_hbm [thread:$0]  %s445, 64, %s447, [#allocation3]
    $region53: #{tpu_custom_call.1} parent=1 // pred_fallthru
      _
    // Predicated region
    $region54: #{tpu_custom_call.1} parent=1 // pred_check
      _
    $region55: #{tpu_custom_call.1} parent=1 // pred_check_branch
      %451 = sbr.rel (0) target = $region57
    $region56: #{tpu_custom_call.1} parent=1 // pred_region
      %453 = dma.done [#allocation3], 64
    $region57: #{tpu_custom_call.1} parent=1 // pred_fallthru
      _
    %454 = vsyncpa [#allocation3], 1

</llo_original>
